<compile_context>
chip_gen: v5e
topology: v5e:2x2
jax: 0.10.0
libtpu: 0.0.40
codegen_flags: <defaults>
</compile_context>

<pallas_src>
import math
import numpy as np
import jax
import jax.numpy as jnp
from jax.experimental import pallas as pl
from jax.experimental.pallas import tpu as pltpu

NEG_SLOPE = 0.01  # nn.LeakyReLU default negative_slope


def _round_up(x, m):
    return ((x + m - 1) // m) * m


# ----------------------------- Pallas kernel ------------------------------ #
def _mlp_orf_kernel(x_ref, orf_ref, keep_ref, w1_ref, b1_ref, w2_ref, b2_ref,
                    w3_ref, worf_ref, b3_ref, o_ref):
    """o = (L3(leaky(L2(leaky(L1(x))))) + orf @ W_orf) * keep.

    bf16 operand streams, f32 accumulation.  The bias-free ORF projection is
    an independent MXU matmul issued first so it can overlap with the VPU
    LeakyReLU work of the dependent L1->L2->L3 chain.  Padding-mask zeroing is
    fused into the epilogue via the (tile_r, 1) keep column.
    """
    orf_part = jnp.dot(orf_ref[...], worf_ref[...],
                       preferred_element_type=jnp.float32)
    h = jnp.dot(x_ref[...], w1_ref[...],
                preferred_element_type=jnp.float32) + b1_ref[...]
    h = jnp.where(h >= 0, h, NEG_SLOPE * h)                          # f32 (VPU)
    h = jnp.dot(h.astype(w2_ref.dtype), w2_ref[...],
                preferred_element_type=jnp.float32) + b2_ref[...]
    h = jnp.where(h >= 0, h, NEG_SLOPE * h)                          # f32 (VPU)
    y = (jnp.dot(h.astype(w3_ref.dtype), w3_ref[...],
                 preferred_element_type=jnp.float32)
         + orf_part + b3_ref[...])
    o_ref[...] = (y * keep_ref[...]).astype(o_ref.dtype)


def prepare_encoder_weights(params):
    """One-time weight prep (reuse across forward calls):
      * bf16 cast of all matmul weights (MXU-native), f32 biases,
      * zero-pad the hidden//2 intermediate to a full 128-lane width
        (pad w1 columns, w2 rows, b1) -> lane-dense L1 output / L2 input.
    """
    H2 = params["w1"].shape[1]
    H2p = _round_up(H2, 128)
    w1, w2, b1 = params["w1"], params["w2"], params["b1"]
    if H2p != H2:
        w1 = jnp.pad(w1, ((0, 0), (0, H2p - H2)))
        w2 = jnp.pad(w2, ((0, H2p - H2), (0, 0)))
        b1 = jnp.pad(b1, ((0, 0), (0, H2p - H2)))
    return dict(
        w1=w1.astype(jnp.bfloat16), b1=b1.astype(jnp.float32),
        w2=w2.astype(jnp.bfloat16), b2=params["b2"].astype(jnp.float32),
        w3=params["w3"].astype(jnp.bfloat16), b3=params["b3"].astype(jnp.float32),
        worf=params["worf"].astype(jnp.bfloat16),
    )


def encode_rows_pallas(x, orf_e, keep, enc_w, *, tile_r=None,
                       out_dtype=jnp.bfloat16):
    """Fused encoding-MLP + ORF projection + padding mask over [R, Din] rows."""
    R, Din = x.shape
    Dorf = orf_e.shape[1]
    H2p = enc_w["w1"].shape[1]
    H = enc_w["w3"].shape[1]

    x16 = x.astype(jnp.bfloat16)
    orf16 = orf_e.astype(jnp.bfloat16)
    keep32 = keep.reshape(R, 1).astype(jnp.float32)

    if tile_r is None:
        if R >= 64:
            # ~R/4 rows/step (>=4 grid steps -> >=2 per v7x TensorCore), capped
            # at 4096 rows to amortise the ~0.35us fixed per-step overhead.
            tile_r = int(min(4096, _round_up(R // 4, 16)))
        else:
            tile_r = _round_up(max(R, 1), 16)
    tile_r = max(16, (int(tile_r) // 16) * 16)   # bf16 sublane packing

    # No host-side padding of the streams: rows are independent and never
    # reduced in-kernel, so the partial edge block's garbage rows are simply
    # masked on writeback and discarded by y[:R].  Tiny-R fallback only.
    R_in = R
    if R < tile_r:
        pad = tile_r - R
        x16 = jnp.pad(x16, ((0, pad), (0, 0)))
        orf16 = jnp.pad(orf16, ((0, pad), (0, 0)))
        keep32 = jnp.pad(keep32, ((0, pad), (0, 0)))
        R_in = tile_r
    grid = (pl.cdiv(R_in, tile_r),)

    # VMEM budget: double-buffered row streams + (conservatively) double-
    # buffered weight/bias blocks.  Keep under 48 MiB (< v7x's 64 MiB / TC).
    out_isz = jnp.dtype(out_dtype).itemsize
    stream_bytes = tile_r * ((Din + Dorf) * 2 + 4 + H * out_isz)
    weight_bytes = (Din * H2p + H2p * H + H * H + Dorf * H) * 2 \
        + (H2p + 2 * H) * 4
    vmem_need = 2 * stream_bytes + 2 * weight_bytes
    assert vmem_need < 48 * 2**20, "row tile too large for v7x VMEM"
    vmem_limit = int(min(48 * 2**20, max(2 * vmem_need + (2 << 20), 8 << 20)))

    rows = lambda c: pl.BlockSpec((tile_r, c), lambda i: (i, 0))
    full = lambda a: pl.BlockSpec(a.shape, lambda i: (0, 0))

    y = pl.pallas_call(
        _mlp_orf_kernel,
        out_shape=jax.ShapeDtypeStruct((R_in, H), out_dtype),
        grid=grid,
        in_specs=[rows(Din), rows(Dorf), rows(1),
                  full(enc_w["w1"]), full(enc_w["b1"]),
                  full(enc_w["w2"]), full(enc_w["b2"]),
                  full(enc_w["w3"]), full(enc_w["worf"]), full(enc_w["b3"])],
        out_specs=rows(H),
        compiler_params=pltpu.CompilerParams(
            dimension_semantics=("parallel",),
            vmem_limit_bytes=vmem_limit),
    )(x16, orf16, keep32,
      enc_w["w1"], enc_w["b1"], enc_w["w2"], enc_w["b2"],
      enc_w["w3"], enc_w["worf"], enc_w["b3"])
    return y[:R]


# --------------------------- parameter init ------------------------------- #
def init_finetune_embedding_params(key, hidden_dim, num_heads, n_layers):
    d_h = hidden_dim // num_heads
    input_dim = 4 * d_h                 # node/edge + type + etype + token
    std = 0.2 / math.sqrt(n_layers)     # init_params for nn.Linear; biases = 0
    ks = jax.random.split(key, 11)
    p = {}
    p["graph_token"] = jax.random.normal(ks[0], (1, hidden_dim), jnp.float32)
    p["sep_token"] = jax.random.normal(ks[1], (1, hidden_dim), jnp.float32)
    p["w_node"] = std * jax.random.normal(ks[2], (4, d_h), jnp.float32)
    p["b_node"] = jnp.zeros((d_h,), jnp.float32)
    p["w_edge"] = std * jax.random.normal(ks[3], (4, d_h), jnp.float32)
    p["b_edge"] = jnp.zeros((d_h,), jnp.float32)
    order = jax.random.normal(ks[4], (2, d_h), jnp.float32)
    p["order_table"] = order.at[0].set(0.0)          # padding_idx=0
    p["etype_table"] = jax.random.normal(ks[5], (4, d_h), jnp.float32)
    p["token_table"] = jax.random.normal(ks[6], (400000, d_h), jnp.float32)
    p["w1"] = std * jax.random.normal(ks[7], (input_dim, hidden_dim // 2), jnp.float32)
    p["b1"] = jnp.zeros((1, hidden_dim // 2), jnp.float32)
    p["w2"] = std * jax.random.normal(ks[8], (hidden_dim // 2, hidden_dim), jnp.float32)
    p["b2"] = jnp.zeros((1, hidden_dim), jnp.float32)
    p["w3"] = std * jax.random.normal(ks[9], (hidden_dim, hidden_dim), jnp.float32)
    p["b3"] = jnp.zeros((1, hidden_dim), jnp.float32)
    p["worf"] = std * jax.random.normal(ks[10], (2 * 64, hidden_dim), jnp.float32)
    return p


# ------------------------------ forward ----------------------------------- #
def finetune_embedding_forward(params, node_data, edge_data, edge_index,
                               etype_ids, token_ids, node_num, edge_num,
                               orf_key, *, hidden_dim, num_heads,
                               orf_node_id_dim=64, enc_weights=None,
                               verify_kernel=False):
    # TODO(synk): the original collates a (center, ncp) graph pair per sample;
    # this synthetic version uses a single graph per batch element with layout
    # [nodes | edges | SEP | pad] along the token axis.
    d_h = hidden_dim // num_heads
    node_num = np.asarray(node_num, np.int64)
    edge_num = np.asarray(edge_num, np.int64)
    B = node_num.shape[0]
    sum_n, sum_e = int(node_num.sum()), int(edge_num.sum())
    seq_len = node_num + edge_num + 1                       # +1 for SEP slot
    T = int(seq_len.max())
    max_n = int(node_num.max())
    node_off = np.concatenate([[0], np.cumsum(node_num)[:-1]])
    edge_off = np.concatenate([[0], np.cumsum(edge_num)[:-1]])

    # ---- host-side static index plumbing (ragged -> padded), vectorised ----
    t_idx = np.arange(T)
    is_node = t_idx[None, :] < node_num[:, None]
    is_edge = (~is_node) & (t_idx[None, :] < (node_num + edge_num)[:, None])
    local_e = t_idx[None, :] - node_num[:, None]
    feat_src = np.where(is_node, node_off[:, None] + t_idx[None, :], sum_n + sum_e)
    feat_src = np.where(is_edge, sum_n + edge_off[:, None] + local_e, feat_src).astype(np.int32)
    edge_src = np.where(is_edge, edge_off[:, None] + local_e, sum_e).astype(np.int32)

    ei = np.asarray(edge_index, np.int32).reshape(-1, 2)                # [sum_e, 2]
    ei_pad = np.concatenate([ei, np.zeros((1, 2), np.int32)], axis=0)   # pad row -> (0,0)
    pidx = np.where(is_node[..., None],
                    np.broadcast_to(t_idx[None, :, None], (B, T, 2)), 0)
    pidx = np.where(is_edge[..., None], ei_pad[edge_src], pidx).astype(np.int32)

    sep_index = (node_num + edge_num).astype(np.int32)
    padding_mask = (t_idx[None, :] >= seq_len[:, None])                  # [B,T] True=pad
    node_valid = (np.arange(max_n)[None, :] < node_num[:, None])         # [B,max_n]

    # ---- node / edge encoders (tiny 4 -> d_h linears; glue) ----
    node_data = node_data.astype(jnp.float32)
    node_data = node_data / jnp.maximum(
        jnp.linalg.norm(node_data, axis=0, keepdims=True), 1e-12)   # F.normalize(dim=0)
    node_feat = node_data @ params["w_node"] + params["b_node"]
    edge_feat = edge_data.astype(jnp.float32) @ params["w_edge"] + params["b_edge"]

    zero_row = jnp.zeros((1, d_h), jnp.float32)
    ne_feat = jnp.concatenate([node_feat, edge_feat, zero_row], 0)[feat_src]  # [B,T,d_h]

    pidx_j = jnp.asarray(pidx)
    order = (pidx_j[..., 0] == pidx_j[..., 1]).astype(jnp.int32)
    type_emb = params["order_table"][order]                                   # [B,T,d_h]

    etype_rows = params["etype_table"][jnp.asarray(etype_ids)]
    token_rows = params["token_table"][jnp.asarray(token_ids) + 1]
    etype_emb = jnp.concatenate([etype_rows, zero_row], 0)[edge_src]
    token_emb = jnp.concatenate([token_rows, zero_row], 0)[edge_src]

    padded_feature = jnp.concatenate([ne_feat, type_emb, etype_emb, token_emb], -1)

    # ---- ORF node ids ----
    # TODO(synk): gaussian_orthogonal_random_matrix_batched is approximated by a
    # batched QR of a Gaussian (any scalar row scaling cancels in the dim=1 normalize).
    g = jax.random.normal(orf_key, (B, max_n, max_n), jnp.float32)
    orf = jnp.linalg.qr(g)[0]
    if orf_node_id_dim > max_n:
        orf_node_id = jnp.pad(orf, ((0, 0), (0, 0), (0, orf_node_id_dim - max_n)))
    else:
        orf_node_id = orf[..., :orf_node_id_dim]
    orf_node_id = orf_node_id / jnp.maximum(
        jnp.linalg.norm(orf_node_id, axis=1, keepdims=True), 1e-12)  # F.normalize(dim=1)
    padded_node_id = orf_node_id * jnp.asarray(node_valid, jnp.float32)[..., None]
    orf_embed = padded_node_id[jnp.arange(B)[:, None, None], pidx_j, :]       # [B,T,2,orf]
    orf_embed = orf_embed.reshape(B, T, 2 * orf_node_id_dim)

    # ---- Pallas hot path over flattened rows ----
    R = B * T
    x_rows = padded_feature.reshape(R, -1)
    orf_rows = orf_embed.reshape(R, -1)
    keep_rows = jnp.asarray((~padding_mask).reshape(R, 1), jnp.float32)
    enc_w = enc_weights if enc_weights is not None else prepare_encoder_weights(params)
    y_rows = encode_rows_pallas(x_rows, orf_rows, keep_rows, enc_w)   # bf16 [R, hidden]

    if verify_kernel:
        # Debug-only: compare against a pure-JAX reference with matching bf16
        # operand rounding / f32 accumulation (kept out of the hot path).
        bf = jnp.bfloat16
        h = jnp.dot(x_rows.astype(bf), params["w1"].astype(bf),
                    preferred_element_type=jnp.float32) + params["b1"]
        h = jnp.where(h >= 0, h, NEG_SLOPE * h)
        h = jnp.dot(h.astype(bf), params["w2"].astype(bf),
                    preferred_element_type=jnp.float32) + params["b2"]
        h = jnp.where(h >= 0, h, NEG_SLOPE * h)
        ref = (jnp.dot(h.astype(bf), params["w3"].astype(bf),
                       preferred_element_type=jnp.float32)
               + jnp.dot(orf_rows.astype(bf), params["worf"].astype(bf),
                         preferred_element_type=jnp.float32)
               + params["b3"]) * keep_rows
        np.testing.assert_allclose(np.asarray(y_rows.astype(jnp.float32)),
                                   np.asarray(ref), rtol=1e-2, atol=1e-2)

    # padding zeroing already fused in the kernel epilogue; remaining glue:
    feat = y_rows.astype(jnp.float32).reshape(B, T, hidden_dim)
    # SEP token overwrite at sep_index, then prepend CLS (graph token)
    feat = feat.at[jnp.arange(B), jnp.asarray(sep_index)].set(params["sep_token"][0])
    cls = jnp.broadcast_to(params["graph_token"][None, :, :], (B, 1, hidden_dim))
    feat = jnp.concatenate([cls, feat], axis=1)

    padding_mask_out = jnp.concatenate(
        [jnp.zeros((B, 1), jnp.float32), jnp.asarray(padding_mask, jnp.float32)], axis=1)
    padded_index_out = jnp.concatenate(
        [jnp.zeros((B, 1, 2), jnp.int32), pidx_j], axis=1)
    return dict(padded_feature=feat,
                padding_mask=padding_mask_out,
                padded_index=padded_index_out,
                block_padding_len=jnp.asarray(0, jnp.int32))


# -------------------------------- main ------------------------------------ #
if __name__ == "__main__":
    # lane-dense config: hidden_dim=128, num_heads=4 -> d_h=32, input_dim=128,
    # 2*orf_dim=128, output=128 (all multiples of 128 lanes)
    hidden_dim, num_heads, n_layers = 128, 4, 4
    node_num = [13, 21, 9, 17]
    edge_num = [18, 26, 12, 22]
    B = len(node_num)
    sum_n, sum_e = sum(node_num), sum(edge_num)

    key = jax.random.PRNGKey(0)
    k_param, k_node, k_edge, k_ei, k_et, k_tok, k_orf = jax.random.split(key, 7)
    params = init_finetune_embedding_params(k_param, hidden_dim, num_heads, n_layers)
    enc_weights = prepare_encoder_weights(params)   # one-time bf16 cast + H/2 pad

    node_data = jax.random.normal(k_node, (sum_n, 4), jnp.float32)
    edge_data = jax.random.normal(k_edge, (sum_e, 4), jnp.float32)
    ei_chunks = []
    for b in range(B):
        kk = jax.random.fold_in(k_ei, b)
        src = jax.random.randint(kk, (edge_num[b],), 0, node_num[b])
        dst = jax.random.randint(jax.random.fold_in(kk, 1), (edge_num[b],), 0, node_num[b])
        ei_chunks.append(np.stack([np.asarray(src), np.asarray(dst)], axis=1))
    edge_index = np.concatenate(ei_chunks, axis=0)               # [sum_e, 2]
    etype_ids = jax.random.randint(k_et, (sum_e,), 0, 4)
    token_ids = jax.random.randint(k_tok, (sum_e,), -1, 1000)    # forward applies +1

    out = finetune_embedding_forward(
        params, node_data, edge_data, edge_index, etype_ids, token_ids,
        node_num, edge_num, k_orf, hidden_dim=hidden_dim, num_heads=num_heads,
        enc_weights=enc_weights, verify_kernel=True)

    jax.block_until_ready(out["padded_feature"])
    T = max(n + e + 1 for n, e in zip(node_num, edge_num))
    assert out["padded_feature"].shape == (B, T + 1, hidden_dim)
    assert out["padding_mask"].shape == (B, T + 1)
    assert out["padded_index"].shape == (B, T + 1, 2)
    print("KERNEL_OK")
</pallas_src>

<mosaic_0001>
module attributes {stable_mosaic.version = 11 : i64} {
  func.func @_mlp_orf_kernel(%arg0: i32, %arg1: memref<48x128xbf16, #tpu.memory_space<vmem>>, %arg2: memref<48x128xbf16, #tpu.memory_space<vmem>>, %arg3: memref<48x1xf32, #tpu.memory_space<vmem>>, %arg4: memref<128x128xbf16, #tpu.memory_space<vmem>>, %arg5: memref<1x128xf32, #tpu.memory_space<vmem>>, %arg6: memref<128x128xbf16, #tpu.memory_space<vmem>>, %arg7: memref<1x128xf32, #tpu.memory_space<vmem>>, %arg8: memref<128x128xbf16, #tpu.memory_space<vmem>>, %arg9: memref<128x128xbf16, #tpu.memory_space<vmem>>, %arg10: memref<1x128xf32, #tpu.memory_space<vmem>>, %arg11: memref<48x128xbf16, #tpu.memory_space<vmem>>) attributes {dimension_semantics = [#tpu.dimension_semantics<parallel>], iteration_bounds = array<i64: 4>, scalar_prefetch = 0 : i64, scratch_operands = 0 : i64, tpu.core_type = #tpu.core_type<tc>, window_params = [{transform_indices = @transform_0, window_bounds = array<i64: 48, 128>}, {transform_indices = @transform_1, window_bounds = array<i64: 48, 128>}, {transform_indices = @transform_2, window_bounds = array<i64: 48, 1>}, {pipeline_mode = #tpu.pipeline_mode<synchronous>, transform_indices = @transform_3, window_bounds = array<i64: 128, 128>}, {pipeline_mode = #tpu.pipeline_mode<synchronous>, transform_indices = @transform_4, window_bounds = array<i64: 1, 128>}, {pipeline_mode = #tpu.pipeline_mode<synchronous>, transform_indices = @transform_5, window_bounds = array<i64: 128, 128>}, {pipeline_mode = #tpu.pipeline_mode<synchronous>, transform_indices = @transform_6, window_bounds = array<i64: 1, 128>}, {pipeline_mode = #tpu.pipeline_mode<synchronous>, transform_indices = @transform_7, window_bounds = array<i64: 128, 128>}, {pipeline_mode = #tpu.pipeline_mode<synchronous>, transform_indices = @transform_8, window_bounds = array<i64: 128, 128>}, {pipeline_mode = #tpu.pipeline_mode<synchronous>, transform_indices = @transform_9, window_bounds = array<i64: 1, 128>}, {transform_indices = @transform_10, window_bounds = array<i64: 48, 128>}]} {
    %c0 = arith.constant 0 : index
    %c0_0 = arith.constant 0 : index
    %0 = vector.load %arg2[%c0, %c0_0] : memref<48x128xbf16, #tpu.memory_space<vmem>>, vector<48x128xbf16>
    %c0_1 = arith.constant 0 : index
    %c0_2 = arith.constant 0 : index
    %1 = vector.load %arg9[%c0_1, %c0_2] : memref<128x128xbf16, #tpu.memory_space<vmem>>, vector<128x128xbf16>
    %cst = arith.constant dense<0.000000e+00> : vector<48x128xf32>
    %2 = tpu.matmul %0, %1, %cst {dimension_numbers = #tpu.dot_dimension_numbers<[1], [0], [0], [1], [0, 0, 1, 1], [], []>} : vector<48x128xbf16>, vector<128x128xbf16>, vector<48x128xf32> -> vector<48x128xf32>
    %c0_3 = arith.constant 0 : index
    %c0_4 = arith.constant 0 : index
    %3 = vector.load %arg1[%c0_3, %c0_4] : memref<48x128xbf16, #tpu.memory_space<vmem>>, vector<48x128xbf16>
    %c0_5 = arith.constant 0 : index
    %c0_6 = arith.constant 0 : index
    %4 = vector.load %arg4[%c0_5, %c0_6] : memref<128x128xbf16, #tpu.memory_space<vmem>>, vector<128x128xbf16>
    %cst_7 = arith.constant dense<0.000000e+00> : vector<48x128xf32>
    %5 = tpu.matmul %3, %4, %cst_7 {dimension_numbers = #tpu.dot_dimension_numbers<[1], [0], [0], [1], [0, 0, 1, 1], [], []>} : vector<48x128xbf16>, vector<128x128xbf16>, vector<48x128xf32> -> vector<48x128xf32>
    %c0_8 = arith.constant 0 : index
    %c0_9 = arith.constant 0 : index
    %6 = vector.load %arg5[%c0_8, %c0_9] : memref<1x128xf32, #tpu.memory_space<vmem>>, vector<1x128xf32>
    %7 = vector.broadcast %6 : vector<1x128xf32> to vector<48x128xf32>
    %8 = arith.addf %5, %7 : vector<48x128xf32>
    %cst_10 = arith.constant 0.000000e+00 : f32
    %9 = vector.broadcast %cst_10 : f32 to vector<48x128xf32>
    %10 = arith.cmpf oge, %8, %9 : vector<48x128xf32>
    %cst_11 = arith.constant 0.00999999977 : f32
    %11 = vector.broadcast %cst_11 : f32 to vector<48x128xf32>
    %12 = arith.mulf %11, %8 : vector<48x128xf32>
    %13 = arith.select %10, %8, %12 : vector<48x128xi1>, vector<48x128xf32>
    %14 = arith.truncf %13 : vector<48x128xf32> to vector<48x128xbf16>
    %c0_12 = arith.constant 0 : index
    %c0_13 = arith.constant 0 : index
    %15 = vector.load %arg6[%c0_12, %c0_13] : memref<128x128xbf16, #tpu.memory_space<vmem>>, vector<128x128xbf16>
    %cst_14 = arith.constant dense<0.000000e+00> : vector<48x128xf32>
    %16 = tpu.matmul %14, %15, %cst_14 {dimension_numbers = #tpu.dot_dimension_numbers<[1], [0], [0], [1], [0, 0, 1, 1], [], []>} : vector<48x128xbf16>, vector<128x128xbf16>, vector<48x128xf32> -> vector<48x128xf32>
    %c0_15 = arith.constant 0 : index
    %c0_16 = arith.constant 0 : index
    %17 = vector.load %arg7[%c0_15, %c0_16] : memref<1x128xf32, #tpu.memory_space<vmem>>, vector<1x128xf32>
    %18 = vector.broadcast %17 : vector<1x128xf32> to vector<48x128xf32>
    %19 = arith.addf %16, %18 : vector<48x128xf32>
    %cst_17 = arith.constant 0.000000e+00 : f32
    %20 = vector.broadcast %cst_17 : f32 to vector<48x128xf32>
    %21 = arith.cmpf oge, %19, %20 : vector<48x128xf32>
    %cst_18 = arith.constant 0.00999999977 : f32
    %22 = vector.broadcast %cst_18 : f32 to vector<48x128xf32>
    %23 = arith.mulf %22, %19 : vector<48x128xf32>
    %24 = arith.select %21, %19, %23 : vector<48x128xi1>, vector<48x128xf32>
    %25 = arith.truncf %24 : vector<48x128xf32> to vector<48x128xbf16>
    %c0_19 = arith.constant 0 : index
    %c0_20 = arith.constant 0 : index
    %26 = vector.load %arg8[%c0_19, %c0_20] : memref<128x128xbf16, #tpu.memory_space<vmem>>, vector<128x128xbf16>
    %cst_21 = arith.constant dense<0.000000e+00> : vector<48x128xf32>
    %27 = tpu.matmul %25, %26, %cst_21 {dimension_numbers = #tpu.dot_dimension_numbers<[1], [0], [0], [1], [0, 0, 1, 1], [], []>} : vector<48x128xbf16>, vector<128x128xbf16>, vector<48x128xf32> -> vector<48x128xf32>
    %28 = arith.addf %27, %2 : vector<48x128xf32>
    %c0_22 = arith.constant 0 : index
    %c0_23 = arith.constant 0 : index
    %29 = vector.load %arg10[%c0_22, %c0_23] : memref<1x128xf32, #tpu.memory_space<vmem>>, vector<1x128xf32>
    %30 = vector.broadcast %29 : vector<1x128xf32> to vector<48x128xf32>
    %31 = arith.addf %28, %30 : vector<48x128xf32>
    %c0_24 = arith.constant 0 : index
    %c0_25 = arith.constant 0 : index
    %32 = vector.load %arg3[%c0_24, %c0_25] : memref<48x1xf32, #tpu.memory_space<vmem>>, vector<48x1xf32>
    %33 = vector.broadcast %32 : vector<48x1xf32> to vector<48x128xf32>
    %34 = arith.mulf %31, %33 : vector<48x128xf32>
    %35 = arith.truncf %34 : vector<48x128xf32> to vector<48x128xbf16>
    %c0_26 = arith.constant 0 : index
    %c0_27 = arith.constant 0 : index
    %36 = vector.load %arg11[%c0_26, %c0_27] : memref<48x128xbf16, #tpu.memory_space<vmem>>, vector<48x128xbf16>
    tpu.vector_store %arg11[%c0_26, %c0_27], %35 {strides = array<i32>} : memref<48x128xbf16, #tpu.memory_space<vmem>>, vector<48x128xbf16>,
    return
  }
  func.func @transform_0(%arg0: i32) -> (i32, i32) {
    %c0_i32 = arith.constant 0 : i32
    %c0_i32_0 = arith.constant 0 : i32
    return %arg0, %c0_i32 : i32, i32
  }
  func.func @transform_1(%arg0: i32) -> (i32, i32) {
    %c0_i32 = arith.constant 0 : i32
    %c0_i32_0 = arith.constant 0 : i32
    return %arg0, %c0_i32 : i32, i32
  }
  func.func @transform_2(%arg0: i32) -> (i32, i32) {
    %c0_i32 = arith.constant 0 : i32
    %c0_i32_0 = arith.constant 0 : i32
    return %arg0, %c0_i32 : i32, i32
  }
  func.func @transform_3(%arg0: i32) -> (i32, i32) {
    %c0_i32 = arith.constant 0 : i32
    %c0_i32_0 = arith.constant 0 : i32
    %c0_i32_1 = arith.constant 0 : i32
    return %c0_i32, %c0_i32_0 : i32, i32
  }
  func.func @transform_4(%arg0: i32) -> (i32, i32) {
    %c0_i32 = arith.constant 0 : i32
    %c0_i32_0 = arith.constant 0 : i32
    %c0_i32_1 = arith.constant 0 : i32
    return %c0_i32, %c0_i32_0 : i32, i32
  }
  func.func @transform_5(%arg0: i32) -> (i32, i32) {
    %c0_i32 = arith.constant 0 : i32
    %c0_i32_0 = arith.constant 0 : i32
    %c0_i32_1 = arith.constant 0 : i32
    return %c0_i32, %c0_i32_0 : i32, i32
  }
  func.func @transform_6(%arg0: i32) -> (i32, i32) {
    %c0_i32 = arith.constant 0 : i32
    %c0_i32_0 = arith.constant 0 : i32
    %c0_i32_1 = arith.constant 0 : i32
    return %c0_i32, %c0_i32_0 : i32, i32
  }
  func.func @transform_7(%arg0: i32) -> (i32, i32) {
    %c0_i32 = arith.constant 0 : i32
    %c0_i32_0 = arith.constant 0 : i32
    %c0_i32_1 = arith.constant 0 : i32
    return %c0_i32, %c0_i32_0 : i32, i32
  }
  func.func @transform_8(%arg0: i32) -> (i32, i32) {
    %c0_i32 = arith.constant 0 : i32
    %c0_i32_0 = arith.constant 0 : i32
    %c0_i32_1 = arith.constant 0 : i32
    return %c0_i32, %c0_i32_0 : i32, i32
  }
  func.func @transform_9(%arg0: i32) -> (i32, i32) {
    %c0_i32 = arith.constant 0 : i32
    %c0_i32_0 = arith.constant 0 : i32
    %c0_i32_1 = arith.constant 0 : i32
    return %c0_i32, %c0_i32_0 : i32, i32
  }
  func.func @transform_10(%arg0: i32) -> (i32, i32) {
    %c0_i32 = arith.constant 0 : i32
    %c0_i32_0 = arith.constant 0 : i32
    return %arg0, %c0_i32 : i32, i32
  }
}

</mosaic_0001>

<llo_original>
// kernel: tpu_custom_call.1
$region0: #{tpu_custom_call.1}
  #allocation0 [shape = 'u32[]', space=smem, size = 0x4, offset = 0x4, fixed_abs, tag = 'smem constant byte address 0x4 - core index']
  #allocation1 [shape = 'u32[72,128]{1,0:T(1,128)}', space=vmem, size = 0x9000, scoped, tag = 'internal scratch']
  %s0 = inlined_call_operand.vmem [shape: bf16[192,128], index: 0, kind: input, shape index: {}]
  %s1 = inlined_call_operand.vmem [shape: bf16[192,128], index: 1, kind: input, shape index: {}]
  %s2 = inlined_call_operand.vmem [shape: f32[192,1], index: 2, kind: input, shape index: {}]
  %s3 = inlined_call_operand.hbm [shape: bf16[128,128], index: 3, kind: input, shape index: {}]
  %s4 = inlined_call_operand.vmem [shape: f32[1,128], index: 4, kind: input, shape index: {}]
  %s5 = inlined_call_operand.hbm [shape: bf16[128,128], index: 5, kind: input, shape index: {}]
  %s6 = inlined_call_operand.vmem [shape: f32[1,128], index: 6, kind: input, shape index: {}]
  %s7 = inlined_call_operand.hbm [shape: bf16[128,128], index: 7, kind: input, shape index: {}]
  %s8 = inlined_call_operand.hbm [shape: bf16[128,128], index: 8, kind: input, shape index: {}]
  %s9 = inlined_call_operand.vmem [shape: f32[1,128], index: 9, kind: input, shape index: {}]
  %s10 = inlined_call_operand.hbm [shape: bf16[192,128], index: 10, kind: output, shape index: {}]
  %s11 = sld [smem:[#allocation0]]
  $region89: #{tpu_custom_call.1} parent=0
    _
  %s13 = ssub.s32 1, %s11
  %s14 = scalar_select 0, %s13, %s11
  $region1: #{tpu_custom_call.1} parent=0
    #allocation2 [shape = 'u8[32768]{0}', space=vmem, size = 0x8000, scoped, tag = 'input window, operand 3, single buffered']
    #allocation3 [shape = 's32[2]{0}', space=sflag, size = 0x8, scoped, tag = 'scoped memory for tpu_custom_call.1']
    #allocation4 [shape = 's32[2]{0}', space=sflag, size = 0x8, scoped, tag = 'scoped memory for tpu_custom_call.1']
    #allocation5 [shape = 'u8[32768]{0}', space=vmem, size = 0x8000, scoped, tag = 'input window, operand 5, single buffered']
    #allocation6 [shape = 's32[1]{0}', space=sflag, size = 0x4, scoped, tag = 'scoped memory for tpu_custom_call.1']
    #allocation7 [shape = 'u8[32768]{0}', space=vmem, size = 0x8000, scoped, tag = 'input window, operand 7, single buffered']
    #allocation8 [shape = 'u8[32768]{0}', space=vmem, size = 0x8000, scoped, tag = 'input window, operand 8, single buffered']
    #allocation9 [shape = 's32[1]{0}', space=sflag, size = 0x4, scoped, tag = 'scoped memory for tpu_custom_call.1']
    #allocation10 [shape = 'u8[24576]{0}', space=vmem, size = 0x6000, scoped, tag = 'output window, operand 0']
    %15 = vsyncpa [#allocation3], 0
    %16 = vsyncpa [#allocation6], 0
    %17 = vsyncpa [#allocation9], 0
    %18 = vsyncpa [#allocation4], 0
    %s19 = scalar_lea.sflag [#allocation4], 1
    %20 = vsyncpa %s19, 0
    loop: start=0, step=1, limit=6
    $region2: #{tpu_custom_call.1} parent=1 // loop_pre_header
      _
    $region3: #{tpu_custom_call.1} parent=1 // loop_header
      %s22 = sphi 0, %s26
      %p23 = scmp.ge.s32.totalorder %s22, 6
      %s32 = sphi 0, %s34
      %s35 = sphi 0, %s32
      %s36 = sphi 0, %s35
      %s52 = sphi 0, %s36
      %s58 = sphi 0, %s60
      %s61 = sphi 0, %s58
      %s62 = sphi 0, %s61
      %s78 = sphi 0, %s62
      %s84 = sphi 0, %s86
      %s87 = sphi 0, %s84
      %s88 = sphi 0, %s87
      %s104 = sphi 0, %s88
      %s108 = sphi 0, %s108
      %s110 = sphi 0, %s108
      %s111 = sphi 0, %s110
      %s125 = sphi 0, %s111
      %s129 = sphi 0, %s129
      %s131 = sphi 0, %s129
      %s132 = sphi 0, %s131
      %s146 = sphi 0, %s132
      %s150 = sphi 0, %s150
      %s152 = sphi 0, %s150
      %s153 = sphi 0, %s152
      %s167 = sphi 0, %s153
      %s171 = sphi 0, %s171
      %s173 = sphi 0, %s171
      %s174 = sphi 0, %s173
      %s188 = sphi 0, %s174
      %s192 = sphi 0, %s192
      %s194 = sphi 0, %s192
      %s195 = sphi 0, %s194
      %s209 = sphi 0, %s195
      %s213 = sphi 0, %s213
      %s215 = sphi 0, %s213
      %s216 = sphi 0, %s215
      %s230 = sphi 0, %s216
      %s234 = sphi 0, %s234
      %s236 = sphi 0, %s234
      %s237 = sphi 0, %s236
      %s251 = sphi 0, %s237
      %s257 = sphi 0, %s259
      %s260 = sphi 0, %s257
      %s261 = sphi 0, %s260
      %s277 = sphi 0, %s261
    $region4: #{tpu_custom_call.1} parent=1 // loop_header_branch
      %25 = sbr.rel (%p23) target = $region8
    $region5: #{tpu_custom_call.1} parent=1 // loop_body
      %s27 = ssub.s32 %s22, 1
      %s28 = ssub.s32 %s22, 2
      %s29 = sadd.s32 %s22, 1
      %s30 = ssub.s32 %s22, %s29
      %p31 = scmp.eq.s32.totalorder %s30, 0
      %s33 = sadd.s32 %s32, 1
      %s34 = scalar_select %p31, %s32, %s33
      %p37 = pneg %p31
      %p38 = scmp.eq.s32.totalorder %s22, 3
      %p39 = por %p37, %p38
      %p40 = scmp.ne.s32.totalorder %s32, %s35
      %p41 = scmp.eq.s32.totalorder %s22, 0
      %p42 = por %p40, %p41
      %p43 = scmp.ne.s32.totalorder %s32, %s35
      %p44 = scmp.eq.s32.totalorder %s27, 3
      %p45 = por %p43, %p44
      %p46 = scmp.ne.s32.totalorder %s35, %s36
      %p47 = scmp.eq.s32.totalorder %s27, 0
      %p48 = por %p46, %p47
      %p49 = scmp.ne.s32.totalorder %s35, %s36
      %p50 = scmp.eq.s32.totalorder %s28, 3
      %p51 = por %p49, %p50
      %p53 = scmp.ne.s32.totalorder %s36, %s52
      %p54 = scmp.eq.s32.totalorder %s28, 0
      %p55 = por %p53, %p54
      %s56 = ssub.s32 %s22, %s29
      %p57 = scmp.eq.s32.totalorder %s56, 0
      %s59 = sadd.s32 %s58, 1
      %s60 = scalar_select %p57, %s58, %s59
      %p63 = pneg %p57
      %p64 = scmp.eq.s32.totalorder %s22, 3
      %p65 = por %p63, %p64
      %p66 = scmp.ne.s32.totalorder %s58, %s61
      %p67 = scmp.eq.s32.totalorder %s22, 0
      %p68 = por %p66, %p67
      %p69 = scmp.ne.s32.totalorder %s58, %s61
      %p70 = scmp.eq.s32.totalorder %s27, 3
      %p71 = por %p69, %p70
      %p72 = scmp.ne.s32.totalorder %s61, %s62
      %p73 = scmp.eq.s32.totalorder %s27, 0
      %p74 = por %p72, %p73
      %p75 = scmp.ne.s32.totalorder %s61, %s62
      %p76 = scmp.eq.s32.totalorder %s28, 3
      %p77 = por %p75, %p76
      %p79 = scmp.ne.s32.totalorder %s62, %s78
      %p80 = scmp.eq.s32.totalorder %s28, 0
      %p81 = por %p79, %p80
      %s82 = ssub.s32 %s22, %s29
      %p83 = scmp.eq.s32.totalorder %s82, 0
      %s85 = sadd.s32 %s84, 1
      %s86 = scalar_select %p83, %s84, %s85
      %p89 = pneg %p83
      %p90 = scmp.eq.s32.totalorder %s22, 3
      %p91 = por %p89, %p90
      %p92 = scmp.ne.s32.totalorder %s84, %s87
      %p93 = scmp.eq.s32.totalorder %s22, 0
      %p94 = por %p92, %p93
      %p95 = scmp.ne.s32.totalorder %s84, %s87
      %p96 = scmp.eq.s32.totalorder %s27, 3
      %p97 = por %p95, %p96
      %p98 = scmp.ne.s32.totalorder %s87, %s88
      %p99 = scmp.eq.s32.totalorder %s27, 0
      %p100 = por %p98, %p99
      %p101 = scmp.ne.s32.totalorder %s87, %s88
      %p102 = scmp.eq.s32.totalorder %s28, 3
      %p103 = por %p101, %p102
      %p105 = scmp.ne.s32.totalorder %s88, %s104
      %p106 = scmp.eq.s32.totalorder %s28, 0
      %p107 = por %p105, %p106
      %s109 = sadd.s32 %s108, 1
      %p112 = scmp.eq.s32.totalorder %s22, 3
      %p113 = scmp.ne.s32.totalorder %s108, %s110
      %p114 = scmp.eq.s32.totalorder %s22, 0
      %p115 = por %p113, %p114
      %p116 = scmp.ne.s32.totalorder %s108, %s110
      %p117 = scmp.eq.s32.totalorder %s27, 3
      %p118 = por %p116, %p117
      %p119 = scmp.ne.s32.totalorder %s110, %s111
      %p120 = scmp.eq.s32.totalorder %s27, 0
      %p121 = por %p119, %p120
      %p122 = scmp.ne.s32.totalorder %s110, %s111
      %p123 = scmp.eq.s32.totalorder %s28, 3
      %p124 = por %p122, %p123
      %p126 = scmp.ne.s32.totalorder %s111, %s125
      %p127 = scmp.eq.s32.totalorder %s28, 0
      %p128 = por %p126, %p127
      %s130 = sadd.s32 %s129, 1
      %p133 = scmp.eq.s32.totalorder %s22, 3
      %p134 = scmp.ne.s32.totalorder %s129, %s131
      %p135 = scmp.eq.s32.totalorder %s22, 0
      %p136 = por %p134, %p135
      %p137 = scmp.ne.s32.totalorder %s129, %s131
      %p138 = scmp.eq.s32.totalorder %s27, 3
      %p139 = por %p137, %p138
      %p140 = scmp.ne.s32.totalorder %s131, %s132
      %p141 = scmp.eq.s32.totalorder %s27, 0
      %p142 = por %p140, %p141
      %p143 = scmp.ne.s32.totalorder %s131, %s132
      %p144 = scmp.eq.s32.totalorder %s28, 3
      %p145 = por %p143, %p144
      %p147 = scmp.ne.s32.totalorder %s132, %s146
      %p148 = scmp.eq.s32.totalorder %s28, 0
      %p149 = por %p147, %p148
      %s151 = sadd.s32 %s150, 1
      %p154 = scmp.eq.s32.totalorder %s22, 3
      %p155 = scmp.ne.s32.totalorder %s150, %s152
      %p156 = scmp.eq.s32.totalorder %s22, 0
      %p157 = por %p155, %p156
      %p158 = scmp.ne.s32.totalorder %s150, %s152
      %p159 = scmp.eq.s32.totalorder %s27, 3
      %p160 = por %p158, %p159
      %p161 = scmp.ne.s32.totalorder %s152, %s153
      %p162 = scmp.eq.s32.totalorder %s27, 0
      %p163 = por %p161, %p162
      %p164 = scmp.ne.s32.totalorder %s152, %s153
      %p165 = scmp.eq.s32.totalorder %s28, 3
      %p166 = por %p164, %p165
      %p168 = scmp.ne.s32.totalorder %s153, %s167
      %p169 = scmp.eq.s32.totalorder %s28, 0
      %p170 = por %p168, %p169
      %s172 = sadd.s32 %s171, 1
      %p175 = scmp.eq.s32.totalorder %s22, 3
      %p176 = scmp.ne.s32.totalorder %s171, %s173
      %p177 = scmp.eq.s32.totalorder %s22, 0
      %p178 = por %p176, %p177
      %p179 = scmp.ne.s32.totalorder %s171, %s173
      %p180 = scmp.eq.s32.totalorder %s27, 3
      %p181 = por %p179, %p180
      %p182 = scmp.ne.s32.totalorder %s173, %s174
      %p183 = scmp.eq.s32.totalorder %s27, 0
      %p184 = por %p182, %p183
      %p185 = scmp.ne.s32.totalorder %s173, %s174
      %p186 = scmp.eq.s32.totalorder %s28, 3
      %p187 = por %p185, %p186
      %p189 = scmp.ne.s32.totalorder %s174, %s188
      %p190 = scmp.eq.s32.totalorder %s28, 0
      %p191 = por %p189, %p190
      %s193 = sadd.s32 %s192, 1
      %p196 = scmp.eq.s32.totalorder %s22, 3
      %p197 = scmp.ne.s32.totalorder %s192, %s194
      %p198 = scmp.eq.s32.totalorder %s22, 0
      %p199 = por %p197, %p198
      %p200 = scmp.ne.s32.totalorder %s192, %s194
      %p201 = scmp.eq.s32.totalorder %s27, 3
      %p202 = por %p200, %p201
      %p203 = scmp.ne.s32.totalorder %s194, %s195
      %p204 = scmp.eq.s32.totalorder %s27, 0
      %p205 = por %p203, %p204
      %p206 = scmp.ne.s32.totalorder %s194, %s195
      %p207 = scmp.eq.s32.totalorder %s28, 3
      %p208 = por %p206, %p207
      %p210 = scmp.ne.s32.totalorder %s195, %s209
      %p211 = scmp.eq.s32.totalorder %s28, 0
      %p212 = por %p210, %p211
      %s214 = sadd.s32 %s213, 1
      %p217 = scmp.eq.s32.totalorder %s22, 3
      %p218 = scmp.ne.s32.totalorder %s213, %s215
      %p219 = scmp.eq.s32.totalorder %s22, 0
      %p220 = por %p218, %p219
      %p221 = scmp.ne.s32.totalorder %s213, %s215
      %p222 = scmp.eq.s32.totalorder %s27, 3
      %p223 = por %p221, %p222
      %p224 = scmp.ne.s32.totalorder %s215, %s216
      %p225 = scmp.eq.s32.totalorder %s27, 0
      %p226 = por %p224, %p225
      %p227 = scmp.ne.s32.totalorder %s215, %s216
      %p228 = scmp.eq.s32.totalorder %s28, 3
      %p229 = por %p227, %p228
      %p231 = scmp.ne.s32.totalorder %s216, %s230
      %p232 = scmp.eq.s32.totalorder %s28, 0
      %p233 = por %p231, %p232
      %s235 = sadd.s32 %s234, 1
      %p238 = scmp.eq.s32.totalorder %s22, 3
      %p239 = scmp.ne.s32.totalorder %s234, %s236
      %p240 = scmp.eq.s32.totalorder %s22, 0
      %p241 = por %p239, %p240
      %p242 = scmp.ne.s32.totalorder %s234, %s236
      %p243 = scmp.eq.s32.totalorder %s27, 3
      %p244 = por %p242, %p243
      %p245 = scmp.ne.s32.totalorder %s236, %s237
      %p246 = scmp.eq.s32.totalorder %s27, 0
      %p247 = por %p245, %p246
      %p248 = scmp.ne.s32.totalorder %s236, %s237
      %p249 = scmp.eq.s32.totalorder %s28, 3
      %p250 = por %p248, %p249
      %p252 = scmp.ne.s32.totalorder %s237, %s251
      %p253 = scmp.eq.s32.totalorder %s28, 0
      %p254 = por %p252, %p253
      %s255 = ssub.s32 %s22, %s29
      %p256 = scmp.eq.s32.totalorder %s255, 0
      %s258 = sadd.s32 %s257, 1
      %s259 = scalar_select %p256, %s257, %s258
      %p262 = pneg %p256
      %p263 = scmp.eq.s32.totalorder %s22, 3
      %p264 = por %p262, %p263
      %p265 = scmp.ne.s32.totalorder %s257, %s260
      %p266 = scmp.eq.s32.totalorder %s22, 0
      %p267 = por %p265, %p266
      %p268 = scmp.ne.s32.totalorder %s257, %s260
      %p269 = scmp.eq.s32.totalorder %s27, 3
      %p270 = por %p268, %p269
      %p271 = scmp.ne.s32.totalorder %s260, %s261
      %p272 = scmp.eq.s32.totalorder %s27, 0
      %p273 = por %p271, %p272
      %p274 = scmp.ne.s32.totalorder %s260, %s261
      %p275 = scmp.eq.s32.totalorder %s28, 3
      %p276 = por %p274, %p275
      %p278 = scmp.ne.s32.totalorder %s261, %s277
      %p279 = scmp.eq.s32.totalorder %s28, 0
      %p280 = por %p278, %p279
      %p281 = scmp.le.s32.totalorder 1, %s22
      %p282 = scmp.lt.s32.totalorder %s22, 5
      %p283 = pnand %p281, %p282
      %p284 = pneg %p283
      // Predicated region
      $region9: #{tpu_custom_call.1} parent=5 // pred_check
        _
      $region10: #{tpu_custom_call.1} parent=5 // pred_check_branch
        %286 = sbr.rel (%p283) target = $region12
      $region11: #{tpu_custom_call.1} parent=5 // pred_region
        %s287 = ssub.s32 %s22, 1
        // Predicated region
        $region13: #{tpu_custom_call.1} parent=11 // pred_check
          %p288 = pneg %p121
        $region14: #{tpu_custom_call.1} parent=11 // pred_check_branch
          %290 = sbr.rel (%p288) target = $region16
        $region15: #{tpu_custom_call.1} parent=11 // pred_region
          %292 = vsyncadd [#allocation3], 0
          %s293 = sshll.u32 %s3, 4
          %s294 = int_to_ptr.hbm [resolvable:$true] %s293
          %s295 = sshll.u32 [#allocation2], 4
          %s296 = int_to_ptr.vmem [resolvable:$true] %s295
          %301 = dma.hbm_to_vmem [thread:$0]  %s294, 1024, %s296, [#allocation3], 64, 64, 4
        $region16: #{tpu_custom_call.1} parent=11 // pred_fallthru
          _
        // Predicated region
        $region17: #{tpu_custom_call.1} parent=11 // pred_check
          %p302 = pneg %p142
        $region18: #{tpu_custom_call.1} parent=11 // pred_check_branch
          %304 = sbr.rel (%p302) target = $region20
        $region19: #{tpu_custom_call.1} parent=11 // pred_region
          _
        $region20: #{tpu_custom_call.1} parent=11 // pred_fallthru
          _
        // Predicated region
        $region21: #{tpu_custom_call.1} parent=11 // pred_check
          %p305 = pneg %p163
        $region22: #{tpu_custom_call.1} parent=11 // pred_check_branch
          %307 = sbr.rel (%p305) target = $region24
        $region23: #{tpu_custom_call.1} parent=11 // pred_region
          %309 = vsyncadd [#allocation6], 0
          %s310 = sshll.u32 %s5, 4
          %s311 = int_to_ptr.hbm [resolvable:$true] %s310
          %s312 = sshll.u32 [#allocation5], 4
          %s313 = int_to_ptr.vmem [resolvable:$true] %s312
          %318 = dma.hbm_to_vmem [thread:$0]  %s311, 1024, %s313, [#allocation6], 64, 64, 4
        $region24: #{tpu_custom_call.1} parent=11 // pred_fallthru
          _
        // Predicated region
        $region25: #{tpu_custom_call.1} parent=11 // pred_check
          %p319 = pneg %p184
        $region26: #{tpu_custom_call.1} parent=11 // pred_check_branch
          %321 = sbr.rel (%p319) target = $region28
        $region27: #{tpu_custom_call.1} parent=11 // pred_region
          _
        $region28: #{tpu_custom_call.1} parent=11 // pred_fallthru
          _
        // Predicated region
        $region29: #{tpu_custom_call.1} parent=11 // pred_check
          %p322 = pneg %p205
        $region30: #{tpu_custom_call.1} parent=11 // pred_check_branch
          %324 = sbr.rel (%p322) target = $region32
        $region31: #{tpu_custom_call.1} parent=11 // pred_region
          %326 = vsyncadd [#allocation6], 0
          %s327 = sshll.u32 %s7, 4
          %s328 = int_to_ptr.hbm [resolvable:$true] %s327
          %s329 = sshll.u32 [#allocation7], 4
          %s330 = int_to_ptr.vmem [resolvable:$true] %s329
          %335 = dma.hbm_to_vmem [thread:$0]  %s328, 1024, %s330, [#allocation6], 64, 64, 4
        $region32: #{tpu_custom_call.1} parent=11 // pred_fallthru
          _
        // Predicated region
        $region33: #{tpu_custom_call.1} parent=11 // pred_check
          %p336 = pneg %p226
        $region34: #{tpu_custom_call.1} parent=11 // pred_check_branch
          %338 = sbr.rel (%p336) target = $region36
        $region35: #{tpu_custom_call.1} parent=11 // pred_region
          %340 = vsyncadd [#allocation9], 0
          %s341 = sshll.u32 %s8, 4
          %s342 = int_to_ptr.hbm [resolvable:$true] %s341
          %s343 = sshll.u32 [#allocation8], 4
          %s344 = int_to_ptr.vmem [resolvable:$true] %s343
          %349 = dma.hbm_to_vmem [thread:$0]  %s342, 1024, %s344, [#allocation9], 64, 64, 4
        $region36: #{tpu_custom_call.1} parent=11 // pred_fallthru
          _
        // Predicated region
        $region37: #{tpu_custom_call.1} parent=11 // pred_check
          %p350 = pneg %p247
        $region38: #{tpu_custom_call.1} parent=11 // pred_check_branch
          %352 = sbr.rel (%p350) target = $region40
        $region39: #{tpu_custom_call.1} parent=11 // pred_region
          _
        $region40: #{tpu_custom_call.1} parent=11 // pred_fallthru
          _
      $region12: #{tpu_custom_call.1} parent=5 // pred_fallthru
        _
      %p353 = scmp.lt.s32.totalorder %s22, 4
      // Predicated region
      $region41: #{tpu_custom_call.1} parent=5 // pred_check
        %p354 = pneg %p353
      $region42: #{tpu_custom_call.1} parent=5 // pred_check_branch
        %356 = sbr.rel (%p354) target = $region44
      $region43: #{tpu_custom_call.1} parent=5 // pred_region
        // Predicated region
        $region45: #{tpu_custom_call.1} parent=43 // pred_check
          %p357 = pneg %p42
        $region46: #{tpu_custom_call.1} parent=43 // pred_check_branch
          %359 = sbr.rel (%p357) target = $region48
        $region47: #{tpu_custom_call.1} parent=43 // pred_region
          %s360 = smul.u32 6, %s22
          %p361 = scmp.lt.s32.totalorder %s360, 23
          %s362 = scalar_select %p361, %s360, 23
          %s363 = smul.addr %s362, 4
          %s364 = scalar_lea.vmem %s0, %s363
          %s365 = smul.u32 6, %s22
        $region48: #{tpu_custom_call.1} parent=43 // pred_fallthru
          _
        // Predicated region
        $region49: #{tpu_custom_call.1} parent=43 // pred_check
          %p366 = pneg %p68
        $region50: #{tpu_custom_call.1} parent=43 // pred_check_branch
          %368 = sbr.rel (%p366) target = $region52
        $region51: #{tpu_custom_call.1} parent=43 // pred_region
          %s369 = smul.u32 6, %s22
          %p370 = scmp.lt.s32.totalorder %s369, 23
          %s371 = scalar_select %p370, %s369, 23
          %s372 = smul.addr %s371, 4
          %s373 = scalar_lea.vmem %s1, %s372
          %s374 = smul.u32 6, %s22
        $region52: #{tpu_custom_call.1} parent=43 // pred_fallthru
          _
        // Predicated region
        $region53: #{tpu_custom_call.1} parent=43 // pred_check
          %p375 = pneg %p94
        $region54: #{tpu_custom_call.1} parent=43 // pred_check_branch
          %377 = sbr.rel (%p375) target = $region56
        $region55: #{tpu_custom_call.1} parent=43 // pred_region
          %s378 = smul.u32 6, %s22
          %p379 = scmp.lt.s32.totalorder %s378, 23
          %s380 = scalar_select %p379, %s378, 23
          %s381 = smul.addr %s380, 8
          %s382 = scalar_lea.vmem %s2, %s381
          %s383 = smul.u32 6, %s22
        $region56: #{tpu_custom_call.1} parent=43 // pred_fallthru
          _
      $region44: #{tpu_custom_call.1} parent=5 // pred_fallthru
        _
      %p384 = scmp.le.s32.totalorder 1, %s22
      %p385 = scmp.lt.s32.totalorder %s22, 5
      %p386 = pnand %p384, %p385
      %p387 = pneg %p386
      // Predicated region
      $region57: #{tpu_custom_call.1} parent=5 // pred_check
        _
      $region58: #{tpu_custom_call.1} parent=5 // pred_check_branch
        %389 = sbr.rel (%p386) target = $region60
      $region59: #{tpu_custom_call.1} parent=5 // pred_region
        %s390 = ssub.s32 %s22, 1
        // Predicated region
        $region61: #{tpu_custom_call.1} parent=59 // pred_check
          %p391 = pneg %p121
        $region62: #{tpu_custom_call.1} parent=59 // pred_check_branch
          %393 = sbr.rel (%p391) target = $region64
        $region63: #{tpu_custom_call.1} parent=59 // pred_region
          %395 = dma.done [#allocation3], 1024
        $region64: #{tpu_custom_call.1} parent=59 // pred_fallthru
          _
        // Predicated region
        $region65: #{tpu_custom_call.1} parent=59 // pred_check
          %p396 = pneg %p163
        $region66: #{tpu_custom_call.1} parent=59 // pred_check_branch
          %398 = sbr.rel (%p396) target = $region68
        $region67: #{tpu_custom_call.1} parent=59 // pred_region
          %400 = dma.done [#allocation6], 1024
        $region68: #{tpu_custom_call.1} parent=59 // pred_fallthru
          _
        // Predicated region
        $region69: #{tpu_custom_call.1} parent=59 // pred_check
          %p401 = pneg %p205
        $region70: #{tpu_custom_call.1} parent=59 // pred_check_branch
          %403 = sbr.rel (%p401) target = $region72
        $region71: #{tpu_custom_call.1} parent=59 // pred_region
          %405 = dma.done [#allocation6], 1024
        $region72: #{tpu_custom_call.1} parent=59 // pred_fallthru
          _
        // Predicated region
        $region73: #{tpu_custom_call.1} parent=59 // pred_check
          %p406 = pneg %p226
        $region74: #{tpu_custom_call.1} parent=59 // pred_check_branch
          %408 = sbr.rel (%p406) target = $region76
        $region75: #{tpu_custom_call.1} parent=59 // pred_region
          %410 = dma.done [#allocation9], 1024
        $region76: #{tpu_custom_call.1} parent=59 // pred_fallthru
          _
        %s411 = smul.u32 6, %s27
        %p412 = scmp.lt.s32.totalorder %s411, 23
        %s413 = scalar_select %p412, %s411, 23
        %s414 = smul.addr %s413, 4
        %s415 = scalar_lea.vmem %s0, %s414
        %p416 = pneg %p48
        %p417 = pneg %p45
        %s418 = smul.u32 6, %s27
        %p419 = scmp.lt.s32.totalorder %s418, 23
        %s420 = scalar_select %p419, %s418, 23
        %s421 = smul.addr %s420, 4
        %s422 = scalar_lea.vmem %s1, %s421
        %p423 = pneg %p74
        %p424 = pneg %p71
        %s425 = smul.u32 6, %s27
        %p426 = scmp.lt.s32.totalorder %s425, 23
        %s427 = scalar_select %p426, %s425, 23
        %s428 = smul.addr %s427, 8
        %s429 = scalar_lea.vmem %s2, %s428
        %p430 = pneg %p100
        %p431 = pneg %p97
        %p432 = pneg %p121
        %p433 = pneg %p118
        %p434 = pneg %p142
        %p435 = pneg %p139
        %p436 = pneg %p163
        %p437 = pneg %p160
        %p438 = pneg %p184
        %p439 = pneg %p181
        %p440 = pneg %p205
        %p441 = pneg %p202
        %p442 = pneg %p226
        %p443 = pneg %p223
        %p444 = pneg %p247
        %p445 = pneg %p244
        %p446 = pneg %p273
        %p447 = pneg %p270
        %s448 = sand.u32 %s260, 1
        %s449 = scalar_lea.sflag [#allocation4], %s448
        %s450 = sand.u32 %s260, 1
        %s451 = smul.addr %s450, 24
        %s452 = scalar_lea.vmem [#allocation10], %s451
        %s453 = smul.u32 6, %s27
        %p454 = scmp.lt.s32.totalorder %s453, 23
        %s455 = scalar_select %p454, %s453, 23
        %s456 = smul.addr %s455, 4
        %s457 = scalar_lea.vmem %s0, %s456
        %s458 = smul.u32 6, %s27
        %s459 = smul.u32 6, %s27
        %p460 = scmp.lt.s32.totalorder %s459, 23
        %s461 = scalar_select %p460, %s459, 23
        %s462 = smul.addr %s461, 4
        %s463 = scalar_lea.vmem %s1, %s462
        %s464 = smul.u32 6, %s27
        %s465 = smul.u32 6, %s27
        %p466 = scmp.lt.s32.totalorder %s465, 23
        %s467 = scalar_select %p466, %s465, 23
        %s468 = smul.addr %s467, 8
        %s469 = scalar_lea.vmem %s2, %s468
        %s470 = smul.u32 6, %s27
        %s471 = smul.u32 6, %s27
        %v472 = vld [vmem:[%s463] sm:$0xf]
        %v473 = vld [vmem:[%s463 + $0x4] sm:$0xf]
        %v474 = vld [vmem:[%s463 + $0x8] sm:$0xf]
        %v475 = vld [vmem:[%s463 + $0xc] sm:$0xf]
        %v476 = vld [vmem:[%s463 + $0x10] sm:$0xf]
        %v477 = vld [vmem:[%s463 + $0x14] sm:$0xf]
        %v478 = vld [vmem:[#allocation8] sm:$0xf]
        %v479 = vld [vmem:[#allocation8 + $0x4] sm:$0xf]
        %v480 = vld [vmem:[#allocation8 + $0x8] sm:$0xf]
        %v481 = vld [vmem:[#allocation8 + $0xc] sm:$0xf]
        %v482 = vld [vmem:[#allocation8 + $0x10] sm:$0xf]
        %v483 = vld [vmem:[#allocation8 + $0x14] sm:$0xf]
        %v484 = vld [vmem:[#allocation8 + $0x18] sm:$0xf]
        %v485 = vld [vmem:[#allocation8 + $0x1c] sm:$0xf]
        %v486 = vld [vmem:[#allocation8 + $0x20] sm:$0xf]
        %v487 = vld [vmem:[#allocation8 + $0x24] sm:$0xf]
        %v488 = vld [vmem:[#allocation8 + $0x28] sm:$0xf]
        %v489 = vld [vmem:[#allocation8 + $0x2c] sm:$0xf]
        %v490 = vld [vmem:[#allocation8 + $0x30] sm:$0xf]
        %v491 = vld [vmem:[#allocation8 + $0x34] sm:$0xf]
        %v492 = vld [vmem:[#allocation8 + $0x38] sm:$0xf]
        %v493 = vld [vmem:[#allocation8 + $0x3c] sm:$0xf]
        %v500 = vunpack.c.l.b16 %v472
        %v501 = vunpack.c.l.b16 %v473
        %v502 = vunpack.c.l.b16 %v474
        %v503 = vunpack.c.l.b16 %v475
        %v504 = vunpack.c.l.b16 %v476
        %v505 = vunpack.c.l.b16 %v477
        %v506 = vpack.c.b16 %v501, %v500
        %v507 = vpack.c.b16 %v503, %v502
        %v508 = vpack.c.b16 %v505, %v504
        %v528 = vunpack.c.l.b16 %v478
        %v529 = vunpack.c.l.b16 %v479
        %v530 = vunpack.c.l.b16 %v480
        %v531 = vunpack.c.l.b16 %v481
        %v532 = vunpack.c.l.b16 %v482
        %v533 = vunpack.c.l.b16 %v483
        %v534 = vunpack.c.l.b16 %v484
        %v535 = vunpack.c.l.b16 %v485
        %v536 = vunpack.c.l.b16 %v486
        %v537 = vunpack.c.l.b16 %v487
        %v538 = vunpack.c.l.b16 %v488
        %v539 = vunpack.c.l.b16 %v489
        %v540 = vunpack.c.l.b16 %v490
        %v541 = vunpack.c.l.b16 %v491
        %v542 = vunpack.c.l.b16 %v492
        %v543 = vunpack.c.l.b16 %v493
        %v544 = vpack.c.b16 %v529, %v528
        %v545 = vpack.c.b16 %v531, %v530
        %v546 = vpack.c.b16 %v533, %v532
        %v547 = vpack.c.b16 %v535, %v534
        %v548 = vpack.c.b16 %v537, %v536
        %v549 = vpack.c.b16 %v539, %v538
        %v550 = vpack.c.b16 %v541, %v540
        %v551 = vpack.c.b16 %v543, %v542
        %560 = vmatpush.bf16.msra.mxu0 %v551
        %561 = vmatpush.bf16.msra.mxu0 %v550
        %562 = vmatpush.bf16.msra.mxu0 %v549
        %563 = vmatpush.bf16.msra.mxu0 %v548
        %564 = vmatpush.bf16.msra.mxu0 %v547
        %565 = vmatpush.bf16.msra.mxu0 %v546
        %566 = vmatpush.bf16.msra.mxu0 %v545
        %567 = vmatpush.bf16.msra.mxu0 %v544
        %568 = vmatmul.bf16.gmra.mxu0 %v506
        %v569 = vpop.f32.mrf.mxu0
        %v570 = vadd.f32 0.0, %v569
        %v571 = vpop.f32.mrf.mxu0
        %v572 = vadd.f32 0.0, %v571
        %573 = vmatmul.bf16.gmra.mxu0 %v507
        %v574 = vpop.f32.mrf.mxu0
        %v575 = vadd.f32 0.0, %v574
        %v576 = vpop.f32.mrf.mxu0
        %v577 = vadd.f32 0.0, %v576
        %578 = vmatmul.bf16.gmra.mxu0 %v508
        %v579 = vpop.f32.mrf.mxu0
        %v580 = vadd.f32 0.0, %v579
        %v581 = vpop.f32.mrf.mxu0
        %v582 = vadd.f32 0.0, %v581
        %583 = vdwg.mxu0
        %v584 = vld [vmem:[%s457] sm:$0xf]
        %v585 = vld [vmem:[%s457 + $0x4] sm:$0xf]
        %v586 = vld [vmem:[%s457 + $0x8] sm:$0xf]
        %v587 = vld [vmem:[%s457 + $0xc] sm:$0xf]
        %v588 = vld [vmem:[%s457 + $0x10] sm:$0xf]
        %v589 = vld [vmem:[%s457 + $0x14] sm:$0xf]
        %v590 = vld [vmem:[#allocation2] sm:$0xf]
        %v591 = vld [vmem:[#allocation2 + $0x4] sm:$0xf]
        %v592 = vld [vmem:[#allocation2 + $0x8] sm:$0xf]
        %v593 = vld [vmem:[#allocation2 + $0xc] sm:$0xf]
        %v594 = vld [vmem:[#allocation2 + $0x10] sm:$0xf]
        %v595 = vld [vmem:[#allocation2 + $0x14] sm:$0xf]
        %v596 = vld [vmem:[#allocation2 + $0x18] sm:$0xf]
        %v597 = vld [vmem:[#allocation2 + $0x1c] sm:$0xf]
        %v598 = vld [vmem:[#allocation2 + $0x20] sm:$0xf]
        %v599 = vld [vmem:[#allocation2 + $0x24] sm:$0xf]
        %v600 = vld [vmem:[#allocation2 + $0x28] sm:$0xf]
        %v601 = vld [vmem:[#allocation2 + $0x2c] sm:$0xf]
        %v602 = vld [vmem:[#allocation2 + $0x30] sm:$0xf]
        %v603 = vld [vmem:[#allocation2 + $0x34] sm:$0xf]
        %v604 = vld [vmem:[#allocation2 + $0x38] sm:$0xf]
        %v605 = vld [vmem:[#allocation2 + $0x3c] sm:$0xf]
        %v606 = vld [vmem:[%s4] sm:$0x1]
        %v608 = vperm.slane %v606, 0
        %v616 = vunpack.c.l.b16 %v584
        %v617 = vunpack.c.l.b16 %v585
        %v618 = vunpack.c.l.b16 %v586
        %v619 = vunpack.c.l.b16 %v587
        %v620 = vunpack.c.l.b16 %v588
        %v621 = vunpack.c.l.b16 %v589
        %v622 = vpack.c.b16 %v617, %v616
        %v623 = vpack.c.b16 %v619, %v618
        %v624 = vpack.c.b16 %v621, %v620
        %v644 = vunpack.c.l.b16 %v590
        %v645 = vunpack.c.l.b16 %v591
        %v646 = vunpack.c.l.b16 %v592
        %v647 = vunpack.c.l.b16 %v593
        %v648 = vunpack.c.l.b16 %v594
        %v649 = vunpack.c.l.b16 %v595
        %v650 = vunpack.c.l.b16 %v596
        %v651 = vunpack.c.l.b16 %v597
        %v652 = vunpack.c.l.b16 %v598
        %v653 = vunpack.c.l.b16 %v599
        %v654 = vunpack.c.l.b16 %v600
        %v655 = vunpack.c.l.b16 %v601
        %v656 = vunpack.c.l.b16 %v602
        %v657 = vunpack.c.l.b16 %v603
        %v658 = vunpack.c.l.b16 %v604
        %v659 = vunpack.c.l.b16 %v605
        %v660 = vpack.c.b16 %v645, %v644
        %v661 = vpack.c.b16 %v647, %v646
        %v662 = vpack.c.b16 %v649, %v648
        %v663 = vpack.c.b16 %v651, %v650
        %v664 = vpack.c.b16 %v653, %v652
        %v665 = vpack.c.b16 %v655, %v654
        %v666 = vpack.c.b16 %v657, %v656
        %v667 = vpack.c.b16 %v659, %v658
        %676 = vmatpush.bf16.msra.mxu0 %v667
        %677 = vmatpush.bf16.msra.mxu0 %v666
        %678 = vmatpush.bf16.msra.mxu0 %v665
        %679 = vmatpush.bf16.msra.mxu0 %v664
        %680 = vmatpush.bf16.msra.mxu0 %v663
        %681 = vmatpush.bf16.msra.mxu0 %v662
        %682 = vmatpush.bf16.msra.mxu0 %v661
        %683 = vmatpush.bf16.msra.mxu0 %v660
        %684 = vmatmul.bf16.gmra.mxu0 %v622
        %v685 = vpop.f32.mrf.mxu0
        %v686 = vadd.f32 %v608, %v685
        %v687 = vpop.f32.mrf.mxu0
        %v688 = vadd.f32 %v608, %v687
        %689 = vmatmul.bf16.gmra.mxu0 %v623
        %v690 = vpop.f32.mrf.mxu0
        %v691 = vadd.f32 %v608, %v690
        %v692 = vpop.f32.mrf.mxu0
        %v693 = vadd.f32 %v608, %v692
        %694 = vmatmul.bf16.gmra.mxu0 %v624
        %v695 = vpop.f32.mrf.mxu0
        %v696 = vadd.f32 %v608, %v695
        %v697 = vpop.f32.mrf.mxu0
        %v698 = vadd.f32 %v608, %v697
        %699 = vdwg.mxu0
        %vm700 = vcmp.ge.f32.partialorder %v686, 0.0
        %vm701 = vcmp.ge.f32.partialorder %v688, 0.0
        %vm702 = vcmp.ge.f32.partialorder %v691, 0.0
        %vm703 = vcmp.ge.f32.partialorder %v693, 0.0
        %vm704 = vcmp.ge.f32.partialorder %v696, 0.0
        %vm705 = vcmp.ge.f32.partialorder %v698, 0.0
        %v706 = vmul.f32 %v686, 0.01
        %v707 = vmul.f32 %v688, 0.01
        %v708 = vmul.f32 %v691, 0.01
        %v709 = vmul.f32 %v693, 0.01
        %v710 = vmul.f32 %v696, 0.01
        %v711 = vmul.f32 %v698, 0.01
        %v712 = vsel %vm700, %v686, %v706
        %v713 = vsel %vm701, %v688, %v707
        %v714 = vsel %vm702, %v691, %v708
        %v715 = vsel %vm703, %v693, %v709
        %v716 = vsel %vm704, %v696, %v710
        %v717 = vsel %vm705, %v698, %v711
        %v718 = vpack.c.bf16 %v713, %v712
        %v719 = vpack.c.bf16 %v715, %v714
        %v720 = vpack.c.bf16 %v717, %v716
        %v721 = vld [vmem:[#allocation5] sm:$0xf]
        %v722 = vld [vmem:[#allocation5 + $0x4] sm:$0xf]
        %v723 = vld [vmem:[#allocation5 + $0x8] sm:$0xf]
        %v724 = vld [vmem:[#allocation5 + $0xc] sm:$0xf]
        %v725 = vld [vmem:[#allocation5 + $0x10] sm:$0xf]
        %v726 = vld [vmem:[#allocation5 + $0x14] sm:$0xf]
        %v727 = vld [vmem:[#allocation5 + $0x18] sm:$0xf]
        %v728 = vld [vmem:[#allocation5 + $0x1c] sm:$0xf]
        %v729 = vld [vmem:[#allocation5 + $0x20] sm:$0xf]
        %v730 = vld [vmem:[#allocation5 + $0x24] sm:$0xf]
        %v731 = vld [vmem:[#allocation5 + $0x28] sm:$0xf]
        %v732 = vld [vmem:[#allocation5 + $0x2c] sm:$0xf]
        %v733 = vld [vmem:[#allocation5 + $0x30] sm:$0xf]
        %v734 = vld [vmem:[#allocation5 + $0x34] sm:$0xf]
        %v735 = vld [vmem:[#allocation5 + $0x38] sm:$0xf]
        %v736 = vld [vmem:[#allocation5 + $0x3c] sm:$0xf]
        %v737 = vld [vmem:[%s6] sm:$0x1]
        %v739 = vperm.slane %v737, 0
        %v757 = vunpack.c.l.b16 %v721
        %v758 = vunpack.c.l.b16 %v722
        %v759 = vunpack.c.l.b16 %v723
        %v760 = vunpack.c.l.b16 %v724
        %v761 = vunpack.c.l.b16 %v725
        %v762 = vunpack.c.l.b16 %v726
        %v763 = vunpack.c.l.b16 %v727
        %v764 = vunpack.c.l.b16 %v728
        %v765 = vunpack.c.l.b16 %v729
        %v766 = vunpack.c.l.b16 %v730
        %v767 = vunpack.c.l.b16 %v731
        %v768 = vunpack.c.l.b16 %v732
        %v769 = vunpack.c.l.b16 %v733
        %v770 = vunpack.c.l.b16 %v734
        %v771 = vunpack.c.l.b16 %v735
        %v772 = vunpack.c.l.b16 %v736
        %v773 = vpack.c.b16 %v758, %v757
        %v774 = vpack.c.b16 %v760, %v759
        %v775 = vpack.c.b16 %v762, %v761
        %v776 = vpack.c.b16 %v764, %v763
        %v777 = vpack.c.b16 %v766, %v765
        %v778 = vpack.c.b16 %v768, %v767
        %v779 = vpack.c.b16 %v770, %v769
        %v780 = vpack.c.b16 %v772, %v771
        %789 = vmatpush.bf16.msra.mxu0 %v780
        %790 = vmatpush.bf16.msra.mxu0 %v779
        %791 = vmatpush.bf16.msra.mxu0 %v778
        %792 = vmatpush.bf16.msra.mxu0 %v777
        %793 = vmatpush.bf16.msra.mxu0 %v776
        %794 = vmatpush.bf16.msra.mxu0 %v775
        %795 = vmatpush.bf16.msra.mxu0 %v774
        %796 = vmatpush.bf16.msra.mxu0 %v773
        %797 = vmatmul.bf16.gmra.mxu0 %v718
        %v798 = vpop.f32.mrf.mxu0
        %v799 = vadd.f32 %v739, %v798
        %v800 = vpop.f32.mrf.mxu0
        %v801 = vadd.f32 %v739, %v800
        %802 = vmatmul.bf16.gmra.mxu0 %v719
        %v803 = vpop.f32.mrf.mxu0
        %v804 = vadd.f32 %v739, %v803
        %v805 = vpop.f32.mrf.mxu0
        %v806 = vadd.f32 %v739, %v805
        %807 = vmatmul.bf16.gmra.mxu0 %v720
        %v808 = vpop.f32.mrf.mxu0
        %v809 = vadd.f32 %v739, %v808
        %v810 = vpop.f32.mrf.mxu0
        %v811 = vadd.f32 %v739, %v810
        %812 = vdwg.mxu0
        %vm813 = vcmp.ge.f32.partialorder %v799, 0.0
        %vm814 = vcmp.ge.f32.partialorder %v801, 0.0
        %vm815 = vcmp.ge.f32.partialorder %v804, 0.0
        %vm816 = vcmp.ge.f32.partialorder %v806, 0.0
        %vm817 = vcmp.ge.f32.partialorder %v809, 0.0
        %vm818 = vcmp.ge.f32.partialorder %v811, 0.0
        %v819 = vmul.f32 %v799, 0.01
        %v820 = vmul.f32 %v801, 0.01
        %v821 = vmul.f32 %v804, 0.01
        %v822 = vmul.f32 %v806, 0.01
        %v823 = vmul.f32 %v809, 0.01
        %v824 = vmul.f32 %v811, 0.01
        %v825 = vsel %vm813, %v799, %v819
        %v826 = vsel %vm814, %v801, %v820
        %v827 = vsel %vm815, %v804, %v821
        %v828 = vsel %vm816, %v806, %v822
        %v829 = vsel %vm817, %v809, %v823
        %v830 = vsel %vm818, %v811, %v824
        %v831 = vpack.c.bf16 %v826, %v825
        %v832 = vpack.c.bf16 %v828, %v827
        %v833 = vpack.c.bf16 %v830, %v829
        %v834 = vld [vmem:[#allocation7] sm:$0xf]
        %v835 = vld [vmem:[#allocation7 + $0x4] sm:$0xf]
        %v836 = vld [vmem:[#allocation7 + $0x8] sm:$0xf]
        %v837 = vld [vmem:[#allocation7 + $0xc] sm:$0xf]
        %v838 = vld [vmem:[#allocation7 + $0x10] sm:$0xf]
        %v839 = vld [vmem:[#allocation7 + $0x14] sm:$0xf]
        %v840 = vld [vmem:[#allocation7 + $0x18] sm:$0xf]
        %v841 = vld [vmem:[#allocation7 + $0x1c] sm:$0xf]
        %v842 = vld [vmem:[#allocation7 + $0x20] sm:$0xf]
        %v843 = vld [vmem:[#allocation7 + $0x24] sm:$0xf]
        %v844 = vld [vmem:[#allocation7 + $0x28] sm:$0xf]
        %v845 = vld [vmem:[#allocation7 + $0x2c] sm:$0xf]
        %v846 = vld [vmem:[#allocation7 + $0x30] sm:$0xf]
        %v847 = vld [vmem:[#allocation7 + $0x34] sm:$0xf]
        %v848 = vld [vmem:[#allocation7 + $0x38] sm:$0xf]
        %v849 = vld [vmem:[#allocation7 + $0x3c] sm:$0xf]
        %v866 = vunpack.c.l.b16 %v834
        %v867 = vunpack.c.l.b16 %v835
        %v868 = vunpack.c.l.b16 %v836
        %v869 = vunpack.c.l.b16 %v837
        %v870 = vunpack.c.l.b16 %v838
        %v871 = vunpack.c.l.b16 %v839
        %v872 = vunpack.c.l.b16 %v840
        %v873 = vunpack.c.l.b16 %v841
        %v874 = vunpack.c.l.b16 %v842
        %v875 = vunpack.c.l.b16 %v843
        %v876 = vunpack.c.l.b16 %v844
        %v877 = vunpack.c.l.b16 %v845
        %v878 = vunpack.c.l.b16 %v846
        %v879 = vunpack.c.l.b16 %v847
        %v880 = vunpack.c.l.b16 %v848
        %v881 = vunpack.c.l.b16 %v849
        %v882 = vpack.c.b16 %v867, %v866
        %v883 = vpack.c.b16 %v869, %v868
        %v884 = vpack.c.b16 %v871, %v870
        %v885 = vpack.c.b16 %v873, %v872
        %v886 = vpack.c.b16 %v875, %v874
        %v887 = vpack.c.b16 %v877, %v876
        %v888 = vpack.c.b16 %v879, %v878
        %v889 = vpack.c.b16 %v881, %v880
        %898 = vmatpush.bf16.msra.mxu0 %v889
        %899 = vmatpush.bf16.msra.mxu0 %v888
        %900 = vmatpush.bf16.msra.mxu0 %v887
        %901 = vmatpush.bf16.msra.mxu0 %v886
        %902 = vmatpush.bf16.msra.mxu0 %v885
        %903 = vmatpush.bf16.msra.mxu0 %v884
        %904 = vmatpush.bf16.msra.mxu0 %v883
        %905 = vmatpush.bf16.msra.mxu0 %v882
        %906 = vmatmul.bf16.gmra.mxu0 %v831
        %v907 = vpop.f32.mrf.mxu0
        %v908 = vadd.f32 %v570, %v907
        %v909 = vpop.f32.mrf.mxu0
        %v910 = vadd.f32 %v572, %v909
        %911 = vmatmul.bf16.gmra.mxu0 %v832
        %v912 = vpop.f32.mrf.mxu0
        %v913 = vadd.f32 %v575, %v912
        %v914 = vpop.f32.mrf.mxu0
        %v915 = vadd.f32 %v577, %v914
        %916 = vmatmul.bf16.gmra.mxu0 %v833
        %v917 = vpop.f32.mrf.mxu0
        %v918 = vadd.f32 %v580, %v917
        %v919 = vpop.f32.mrf.mxu0
        %v920 = vadd.f32 %v582, %v919
        %921 = vdwg.mxu0
        %v922 = vld [vmem:[%s9] sm:$0x1]
        %v924 = vperm.slane %v922, 0
        %v926 = vadd.f32 %v908, %v924
        %v927 = vadd.f32 %v910, %v924
        %v928 = vadd.f32 %v913, %v924
        %v929 = vadd.f32 %v915, %v924
        %v930 = vadd.f32 %v918, %v924
        %v931 = vadd.f32 %v920, %v924
        %v932 = vld [vmem:[%s469] sm:$0xff]
        %v933 = vld [vmem:[%s469 + $0x8] sm:$0xff]
        %v934 = vld [vmem:[%s469 + $0x10] sm:$0xff]
        %v935 = vld [vmem:[%s469 + $0x18] sm:$0xff]
        %v936 = vld [vmem:[%s469 + $0x20] sm:$0xff]
        %v937 = vld [vmem:[%s469 + $0x28] sm:$0xff]
        %939 = vset.pattern.permute.xlu0 0
        %940 = vperm.xlu0 %939, %v932
        %v941 = vpop.permute.xlu0 %940
        %944 = vset.pattern.permute.xlu0 0
        %945 = vperm.xlu0 %944, %v933
        %v946 = vpop.permute.xlu0 %945
        %949 = vset.pattern.permute.xlu0 0
        %950 = vperm.xlu0 %949, %v934
        %v951 = vpop.permute.xlu0 %950
        %954 = vset.pattern.permute.xlu0 0
        %955 = vperm.xlu0 %954, %v935
        %v956 = vpop.permute.xlu0 %955
        %959 = vset.pattern.permute.xlu0 0
        %960 = vperm.xlu0 %959, %v936
        %v961 = vpop.permute.xlu0 %960
        %964 = vset.pattern.permute.xlu0 0
        %965 = vperm.xlu0 %964, %v937
        %v966 = vpop.permute.xlu0 %965
        %v968 = vmul.f32 %v926, %v941
        %v969 = vmul.f32 %v927, %v946
        %v970 = vmul.f32 %v928, %v951
        %v971 = vmul.f32 %v929, %v956
        %v972 = vmul.f32 %v930, %v961
        %v973 = vmul.f32 %v931, %v966
        %v974 = vpack.c.bf16 %v968, %v968
        %v975 = vpack.c.bf16 %v969, %v969
        %v976 = vpack.c.bf16 %v970, %v970
        %v977 = vpack.c.bf16 %v971, %v971
        %v978 = vpack.c.bf16 %v972, %v972
        %v979 = vpack.c.bf16 %v973, %v973
        %980 = vst [vmem:[%s452] sm:$0xf] %v974
        %981 = vst [vmem:[%s452 + $0x4] sm:$0xf] %v975
        %982 = vst [vmem:[%s452 + $0x8] sm:$0xf] %v976
        %983 = vst [vmem:[%s452 + $0xc] sm:$0xf] %v977
        %984 = vst [vmem:[%s452 + $0x10] sm:$0xf] %v978
        %985 = vst [vmem:[%s452 + $0x14] sm:$0xf] %v979
        %s986 = sand.u32 %s260, 1
        %s987 = scalar_lea.sflag [#allocation4], %s986
        %s988 = sand.u32 %s260, 1
        %s989 = smul.addr %s988, 24
        %s990 = scalar_lea.vmem [#allocation10], %s989
        // Predicated region
        $region77: #{tpu_custom_call.1} parent=59 // pred_check
          %p991 = pneg %p270
        $region78: #{tpu_custom_call.1} parent=59 // pred_check_branch
          %993 = sbr.rel (%p991) target = $region80
        $region79: #{tpu_custom_call.1} parent=59 // pred_region
          %s994 = smul.u32 6, %s27
          %996 = vsyncadd %s987, 0
          %s997 = smul.addr %s994, 4
          %s998 = scalar_lea.hbm %s10, %s997
          %s999 = sshll.u32 %s990, 4
          %s1000 = int_to_ptr.vmem [resolvable:$true] %s999
          %s1001 = sshll.u32 %s998, 4
          %s1002 = int_to_ptr.hbm [resolvable:$true] %s1001
          %1007 = dma.vmem_to_hbm [thread:$0]  %s1000, 384, %s1002, %s987, 64, 64, 4
        $region80: #{tpu_custom_call.1} parent=59 // pred_fallthru
          _
      $region60: #{tpu_custom_call.1} parent=5 // pred_fallthru
        _
      %p1008 = scmp.le.s32.totalorder 2, %s22
      // Predicated region
      $region81: #{tpu_custom_call.1} parent=5 // pred_check
        %p1009 = pneg %p1008
      $region82: #{tpu_custom_call.1} parent=5 // pred_check_branch
        %1011 = sbr.rel (%p1009) target = $region84
      $region83: #{tpu_custom_call.1} parent=5 // pred_region
        %s1012 = ssub.s32 %s22, 2
        // Predicated region
        $region85: #{tpu_custom_call.1} parent=83 // pred_check
          %p1013 = pneg %p276
        $region86: #{tpu_custom_call.1} parent=83 // pred_check_branch
          %1015 = sbr.rel (%p1013) target = $region88
        $region87: #{tpu_custom_call.1} parent=83 // pred_region
          %s1016 = sand.u32 %s261, 1
          %s1017 = scalar_lea.sflag [#allocation4], %s1016
          %s1018 = sand.u32 %s261, 1
          %s1019 = smul.addr %s1018, 24
          %s1020 = scalar_lea.vmem [#allocation10], %s1019
          %1022 = dma.done %s1017, 384
        $region88: #{tpu_custom_call.1} parent=83 // pred_fallthru
          _
      $region84: #{tpu_custom_call.1} parent=5 // pred_fallthru
        _
    $region6: #{tpu_custom_call.1} parent=1 // loop_footer
      %s26 = sadd.s32 1, %s22
    $region7: #{tpu_custom_call.1} parent=1 // loop_footer_branch
      %21 = sbr.rel target = $region3
    $region8: #{tpu_custom_call.1} parent=1 // loop_exit
      _
    %1023 = vsyncpa [#allocation3], 1
    %s1024 = scalar_lea.sflag [#allocation3], 1
    %1025 = vsyncpa %s1024, 1
    %1026 = vsyncpa [#allocation6], 1
    %1027 = vsyncpa [#allocation9], 1
    %1028 = vsyncpa [#allocation4], 1
    %s1029 = scalar_lea.sflag [#allocation4], 1
    %1030 = vsyncpa %s1029, 1

</llo_original>
